<compile_context>
chip_gen: v6e
topology: v6e:2x2x1
jax: 0.10.0
libtpu: 0.0.40
codegen_flags: <defaults>
</compile_context>

<pallas_src>
import functools

import jax
import jax.numpy as jnp
from jax import lax
from jax.experimental import pallas as pl
from jax.experimental.pallas import tpu as pltpu

IN_FEATURES = 4
HIDDEN = 64
OUT_FEATURES = 2

LANE = 128              # TPU lane width; batch tiles are multiples of this
DEFAULT_TILE_B = 32768  # DMA tile width (columns); ~0.75 MB/step in+out, amortizes step overhead
DEFAULT_CHUNK_B = 2048  # compute chunk width; bounds the [64, chunk] hidden tile to ~512 KB


def _round_up(n, m):
    return ((n + m - 1) // m) * m


def mlp_kernel(xt_ref, w1_ref, b1_ref, w2_ref, b2_ref, ot_ref, *, chunk):
    # xt_ref: [IN_FEATURES, TILE_B]   (batch on lanes -> dense loads)
    # w1_ref: [HIDDEN, IN_FEATURES]   b1_ref: [HIDDEN, 1]
    # w2_ref: [OUT_FEATURES, HIDDEN]  b2_ref: [OUT_FEATURES, 1]
    # ot_ref: [OUT_FEATURES, TILE_B]  (batch on lanes -> dense stores)
    tile_b = ot_ref.shape[-1]
    n_chunks = tile_b // chunk

    w1 = w1_ref[...]
    w2 = w2_ref[...]
    # Hoist bias broadcasts out of the chunk loop (JAX doesn't CSE broadcast_in_dim).
    b1 = jnp.broadcast_to(b1_ref[...], (HIDDEN, chunk))
    b2 = jnp.broadcast_to(b2_ref[...], (OUT_FEATURES, chunk))

    def body(c, carry):
        off = pl.multiple_of(c * chunk, chunk)          # lane-aligned chunk offset
        xc = xt_ref[:, pl.ds(off, chunk)]               # [4, chunk]
        h = jnp.dot(w1, xc, preferred_element_type=jnp.float32) + b1   # [64, chunk] on MXU
        h = jnp.tanh(h)                                 # EUP transcendental (binding unit)
        y = jnp.dot(w2, h, preferred_element_type=jnp.float32) + b2    # [2, chunk]
        ot_ref[:, pl.ds(off, chunk)] = y.astype(ot_ref.dtype)
        return carry

    lax.fori_loop(0, n_chunks, body, 0)


@functools.partial(jax.jit, static_argnames=("tile_b", "chunk_b"))
def mlp_forward(x, w1, b1, w2, b2, *, tile_b=DEFAULT_TILE_B, chunk_b=DEFAULT_CHUNK_B):
    """Forward of Linear(4,64) -> Tanh -> Linear(64,2).

    x:  [B, 4] f32;  w1: [64, 4], b1: [64];  w2: [2, 64], b2: [2]  (PyTorch layout)
    returns [B, 2] f32
    """
    batch = x.shape[0]
    b_ceil = _round_up(batch, LANE)

    eff_tile = min(tile_b, b_ceil)
    chunk = min(chunk_b, eff_tile)
    # v7x megacore: keep >= 2 grid steps when the batch is big enough to split across TCs.
    if b_ceil >= 2 * chunk:
        eff_tile = min(eff_tile, _round_up((b_ceil + 1) // 2, chunk))
    eff_tile = _round_up(eff_tile, chunk)               # tile is an exact multiple of chunk

    xt = x.T                                            # [4, B]: batch on lanes
    b1c = b1.reshape(HIDDEN, 1)
    b2c = b2.reshape(OUT_FEATURES, 1)

    yt = pl.pallas_call(
        functools.partial(mlp_kernel, chunk=chunk),
        out_shape=jax.ShapeDtypeStruct((OUT_FEATURES, batch), x.dtype),
        grid_spec=pltpu.PrefetchScalarGridSpec(
            num_scalar_prefetch=0,
            grid=(pl.cdiv(batch, eff_tile),),           # ragged last block masked by Pallas
            in_specs=[
                pl.BlockSpec((IN_FEATURES, eff_tile), lambda i: (0, i)),   # x^T tile (streamed)
                pl.BlockSpec((HIDDEN, IN_FEATURES), lambda i: (0, 0)),     # W1 resident
                pl.BlockSpec((HIDDEN, 1), lambda i: (0, 0)),               # b1 resident
                pl.BlockSpec((OUT_FEATURES, HIDDEN), lambda i: (0, 0)),    # W2 resident
                pl.BlockSpec((OUT_FEATURES, 1), lambda i: (0, 0)),         # b2 resident
            ],
            out_specs=pl.BlockSpec((OUT_FEATURES, eff_tile), lambda i: (0, i)),
        ),
        compiler_params=pltpu.CompilerParams(
            dimension_semantics=("parallel",),          # shard batch axis on v7x megacore
            vmem_limit_bytes=32 * 1024 * 1024,          # explicit headroom; fits all chips
        ),
    )(xt, w1, b1c, w2, b2c)

    return yt.T                                         # back to [B, 2] (PyTorch layout)


def init_params(key):
    """Deterministic init mimicking torch.nn.Linear default U[-1/sqrt(fan_in), +]."""
    k1, k2, k3, k4 = jax.random.split(key, 4)
    bound1 = 1.0 / jnp.sqrt(IN_FEATURES)
    bound2 = 1.0 / jnp.sqrt(HIDDEN)
    w1 = jax.random.uniform(k1, (HIDDEN, IN_FEATURES), jnp.float32, -bound1, bound1)
    b1 = jax.random.uniform(k2, (HIDDEN,), jnp.float32, -bound1, bound1)
    w2 = jax.random.uniform(k3, (OUT_FEATURES, HIDDEN), jnp.float32, -bound2, bound2)
    b2 = jax.random.uniform(k4, (OUT_FEATURES,), jnp.float32, -bound2, bound2)
    return w1, b1, w2, b2


if __name__ == "__main__":
    key = jax.random.PRNGKey(0)
    kx, kp = jax.random.split(key)
    w1, b1, w2, b2 = init_params(kp)

    # Small demo batch consistent with the module (features = 4); single ragged block.
    batch = 8
    x = jax.random.normal(kx, (batch, IN_FEATURES), jnp.float32)
    out = mlp_forward(x, w1, b1, w2, b2)
    jax.block_until_ready(out)
    ref = jnp.tanh(x @ w1.T + b1[None, :]) @ w2.T + b2[None, :]
    assert out.shape == (batch, OUT_FEATURES)
    assert jnp.allclose(out, ref, atol=1e-5, rtol=1e-5)

    # Larger ragged batch: exercises multi-step grid, multi-chunk inner loop, masked last block.
    batch2 = 5000
    x2 = jax.random.normal(kx, (batch2, IN_FEATURES), jnp.float32)
    out2 = mlp_forward(x2, w1, b1, w2, b2)
    jax.block_until_ready(out2)
    ref2 = jnp.tanh(x2 @ w1.T + b1[None, :]) @ w2.T + b2[None, :]
    assert out2.shape == (batch2, OUT_FEATURES)
    assert jnp.allclose(out2, ref2, atol=1e-5, rtol=1e-5)

    print("KERNEL_OK")
</pallas_src>

<mosaic_0001>
module attributes {stable_mosaic.version = 11 : i64} {
  func.func @mlp_kernel(%arg0: i32, %arg1: memref<4x128xf32, #tpu.memory_space<vmem>>, %arg2: memref<64x4xf32, #tpu.memory_space<vmem>>, %arg3: memref<64x1xf32, #tpu.memory_space<vmem>>, %arg4: memref<2x64xf32, #tpu.memory_space<vmem>>, %arg5: memref<2x1xf32, #tpu.memory_space<vmem>>, %arg6: memref<2x128xf32, #tpu.memory_space<vmem>>) attributes {dimension_semantics = [#tpu.dimension_semantics<parallel>], iteration_bounds = array<i64: 1>, scalar_prefetch = 0 : i64, scratch_operands = 0 : i64, tpu.core_type = #tpu.core_type<tc>, window_params = [{transform_indices = @transform_0, window_bounds = array<i64: 4, 128>}, {pipeline_mode = #tpu.pipeline_mode<synchronous>, transform_indices = @transform_1, window_bounds = array<i64: 64, 4>}, {pipeline_mode = #tpu.pipeline_mode<synchronous>, transform_indices = @transform_2, window_bounds = array<i64: 64, 1>}, {pipeline_mode = #tpu.pipeline_mode<synchronous>, transform_indices = @transform_3, window_bounds = array<i64: 2, 64>}, {pipeline_mode = #tpu.pipeline_mode<synchronous>, transform_indices = @transform_4, window_bounds = array<i64: 2, 1>}, {transform_indices = @transform_5, window_bounds = array<i64: 2, 128>}]} {
    %c0 = arith.constant 0 : index
    %c0_0 = arith.constant 0 : index
    %0 = vector.load %arg2[%c0, %c0_0] : memref<64x4xf32, #tpu.memory_space<vmem>>, vector<64x4xf32>
    %c0_1 = arith.constant 0 : index
    %c0_2 = arith.constant 0 : index
    %1 = vector.load %arg4[%c0_1, %c0_2] : memref<2x64xf32, #tpu.memory_space<vmem>>, vector<2x64xf32>
    %c0_3 = arith.constant 0 : index
    %c0_4 = arith.constant 0 : index
    %2 = vector.load %arg3[%c0_3, %c0_4] : memref<64x1xf32, #tpu.memory_space<vmem>>, vector<64x1xf32>
    %3 = vector.shape_cast %2 : vector<64x1xf32> to vector<64x1xf32>
    %4 = vector.broadcast %3 : vector<64x1xf32> to vector<64x128xf32>
    %c0_5 = arith.constant 0 : index
    %c0_6 = arith.constant 0 : index
    %5 = vector.load %arg5[%c0_5, %c0_6] : memref<2x1xf32, #tpu.memory_space<vmem>>, vector<2x1xf32>
    %6 = vector.shape_cast %5 : vector<2x1xf32> to vector<2x1xf32>
    %7 = vector.broadcast %6 : vector<2x1xf32> to vector<2x128xf32>
    %c0_i32 = arith.constant 0 : i32
    %c128_i32 = arith.constant 128 : i32
    %8 = arith.muli %c0_i32, %c128_i32 : i32
    %9 = tpu.assume_multiple %8, 128 : i32
    %c0_7 = arith.constant 0 : index
    %10 = arith.index_cast %9 : i32 to index
    %11 = vector.load %arg1[%c0_7, %10] : memref<4x128xf32, #tpu.memory_space<vmem>>, vector<4x128xf32>
    %cst = arith.constant dense<0.000000e+00> : vector<64x128xf32>
    %12 = tpu.matmul %0, %11, %cst {dimension_numbers = #tpu.dot_dimension_numbers<[1], [0], [0], [1], [0, 0, 1, 1], [], []>} : vector<64x4xf32>, vector<4x128xf32>, vector<64x128xf32> -> vector<64x128xf32>
    %13 = arith.addf %12, %4 : vector<64x128xf32>
    %14 = math.tanh %13 : vector<64x128xf32>
    %cst_8 = arith.constant dense<0.000000e+00> : vector<2x128xf32>
    %15 = tpu.matmul %1, %14, %cst_8 {dimension_numbers = #tpu.dot_dimension_numbers<[1], [0], [0], [1], [0, 0, 1, 1], [], []>} : vector<2x64xf32>, vector<64x128xf32>, vector<2x128xf32> -> vector<2x128xf32>
    %16 = arith.addf %15, %7 : vector<2x128xf32>
    %c0_9 = arith.constant 0 : index
    %17 = arith.index_cast %9 : i32 to index
    %18 = vector.load %arg6[%c0_9, %17] : memref<2x128xf32, #tpu.memory_space<vmem>>, vector<2x128xf32>
    tpu.vector_store %arg6[%c0_9, %17], %16 {strides = array<i32>} : memref<2x128xf32, #tpu.memory_space<vmem>>, vector<2x128xf32>,
    %c1_i32 = arith.constant 1 : i32
    return
  }
  func.func @transform_0(%arg0: i32) -> (i32, i32) {
    %c0_i32 = arith.constant 0 : i32
    %c0_i32_0 = arith.constant 0 : i32
    return %c0_i32, %arg0 : i32, i32
  }
  func.func @transform_1(%arg0: i32) -> (i32, i32) {
    %c0_i32 = arith.constant 0 : i32
    %c0_i32_0 = arith.constant 0 : i32
    %c0_i32_1 = arith.constant 0 : i32
    return %c0_i32, %c0_i32_0 : i32, i32
  }
  func.func @transform_2(%arg0: i32) -> (i32, i32) {
    %c0_i32 = arith.constant 0 : i32
    %c0_i32_0 = arith.constant 0 : i32
    %c0_i32_1 = arith.constant 0 : i32
    return %c0_i32, %c0_i32_0 : i32, i32
  }
  func.func @transform_3(%arg0: i32) -> (i32, i32) {
    %c0_i32 = arith.constant 0 : i32
    %c0_i32_0 = arith.constant 0 : i32
    %c0_i32_1 = arith.constant 0 : i32
    return %c0_i32, %c0_i32_0 : i32, i32
  }
  func.func @transform_4(%arg0: i32) -> (i32, i32) {
    %c0_i32 = arith.constant 0 : i32
    %c0_i32_0 = arith.constant 0 : i32
    %c0_i32_1 = arith.constant 0 : i32
    return %c0_i32, %c0_i32_0 : i32, i32
  }
  func.func @transform_5(%arg0: i32) -> (i32, i32) {
    %c0_i32 = arith.constant 0 : i32
    %c0_i32_0 = arith.constant 0 : i32
    return %c0_i32, %arg0 : i32, i32
  }
}

</mosaic_0001>

<llo_original>
// kernel: mlp_forward.1
$region0: #{mlp_forward.1}
  #allocation0 [shape = 'u32[]', space=smem, size = 0x4, offset = 0x4, fixed_abs, tag = 'smem constant byte address 0x4 - core index']
  #allocation1 [shape = 'u32[144,128]{1,0:T(1,128)}', space=vmem, size = 0x12000, scoped, tag = 'internal scratch']
  %s0 = inlined_call_operand.vmem [shape: f32[4,8], index: 0, kind: input, shape index: {}]
  %s1 = inlined_call_operand.vmem [shape: f32[64,4], index: 1, kind: input, shape index: {}]
  %s2 = inlined_call_operand.vmem [shape: f32[64,1], index: 2, kind: input, shape index: {}]
  %s3 = inlined_call_operand.vmem [shape: f32[2,64], index: 3, kind: input, shape index: {}]
  %s4 = inlined_call_operand.vmem [shape: f32[2,1], index: 4, kind: input, shape index: {}]
  %s5 = inlined_call_operand.hbm [shape: f32[2,8], index: 5, kind: output, shape index: {}]
  %s6 = sld [smem:[#allocation0]]
  $region30: #{mlp_forward.1} parent=0
    _
  %s8 = ssub.s32 1, %s6
  %s9 = scalar_select 0, %s8, %s6
  $region1: #{mlp_forward.1} parent=0
    #allocation2 [shape = 'u8[1024]{0}', space=vmem, size = 0x400, scoped, tag = 'output window, operand 0, single buffered']
    #allocation3 [shape = 's32[1]{0}', space=sflag, size = 0x4, scoped, tag = 'scoped memory for mlp_forward.1']
    %10 = vsyncpa [#allocation3], 0
    // Predicated region
    $region2: #{mlp_forward.1} parent=1 // pred_check
      _
    $region3: #{mlp_forward.1} parent=1 // pred_check_branch
      %12 = sbr.rel (0) target = $region5
    $region4: #{mlp_forward.1} parent=1 // pred_region
      _
    $region5: #{mlp_forward.1} parent=1 // pred_fallthru
      _
    // Predicated region
    $region6: #{mlp_forward.1} parent=1 // pred_check
      _
    $region7: #{mlp_forward.1} parent=1 // pred_check_branch
      %14 = sbr.rel (0) target = $region9
    $region8: #{mlp_forward.1} parent=1 // pred_region
      _
    $region9: #{mlp_forward.1} parent=1 // pred_fallthru
      _
    // Predicated region
    $region10: #{mlp_forward.1} parent=1 // pred_check
      _
    $region11: #{mlp_forward.1} parent=1 // pred_check_branch
      %16 = sbr.rel (0) target = $region13
    $region12: #{mlp_forward.1} parent=1 // pred_region
      _
    $region13: #{mlp_forward.1} parent=1 // pred_fallthru
      _
    // Predicated region
    $region14: #{mlp_forward.1} parent=1 // pred_check
      _
    $region15: #{mlp_forward.1} parent=1 // pred_check_branch
      %18 = sbr.rel (0) target = $region17
    $region16: #{mlp_forward.1} parent=1 // pred_region
      _
    $region17: #{mlp_forward.1} parent=1 // pred_fallthru
      _
    // Predicated region
    $region18: #{mlp_forward.1} parent=1 // pred_check
      _
    $region19: #{mlp_forward.1} parent=1 // pred_check_branch
      %20 = sbr.rel (0) target = $region21
    $region20: #{mlp_forward.1} parent=1 // pred_region
      _
    $region21: #{mlp_forward.1} parent=1 // pred_fallthru
      _
    %v21 = vld [vmem:[%s1] sm:$0xff]
    %v22 = vld [vmem:[%s1 + $0x8] sm:$0xff]
    %v23 = vld [vmem:[%s1 + $0x10] sm:$0xff]
    %v24 = vld [vmem:[%s1 + $0x18] sm:$0xff]
    %v25 = vld [vmem:[%s1 + $0x20] sm:$0xff]
    %v26 = vld [vmem:[%s1 + $0x28] sm:$0xff]
    %v27 = vld [vmem:[%s1 + $0x30] sm:$0xff]
    %v28 = vld [vmem:[%s1 + $0x38] sm:$0xff]
    %v29 = vld [vmem:[%s3] sm:$0x3]
    %v30 = vld [vmem:[%s2] sm:$0xff]
    %v31 = vld [vmem:[%s2 + $0x8] sm:$0xff]
    %v32 = vld [vmem:[%s2 + $0x10] sm:$0xff]
    %v33 = vld [vmem:[%s2 + $0x18] sm:$0xff]
    %v34 = vld [vmem:[%s2 + $0x20] sm:$0xff]
    %v35 = vld [vmem:[%s2 + $0x28] sm:$0xff]
    %v36 = vld [vmem:[%s2 + $0x30] sm:$0xff]
    %v37 = vld [vmem:[%s2 + $0x38] sm:$0xff]
    %39 = vset.pattern.permute.xlu0 0
    %40 = vperm.xlu0 %39, %v30
    %v41 = vpop.permute.xlu0 %40
    %44 = vset.pattern.permute.xlu0 0
    %45 = vperm.xlu0 %44, %v31
    %v46 = vpop.permute.xlu0 %45
    %49 = vset.pattern.permute.xlu0 0
    %50 = vperm.xlu0 %49, %v32
    %v51 = vpop.permute.xlu0 %50
    %54 = vset.pattern.permute.xlu0 0
    %55 = vperm.xlu0 %54, %v33
    %v56 = vpop.permute.xlu0 %55
    %59 = vset.pattern.permute.xlu0 0
    %60 = vperm.xlu0 %59, %v34
    %v61 = vpop.permute.xlu0 %60
    %64 = vset.pattern.permute.xlu0 0
    %65 = vperm.xlu0 %64, %v35
    %v66 = vpop.permute.xlu0 %65
    %69 = vset.pattern.permute.xlu0 0
    %70 = vperm.xlu0 %69, %v36
    %v71 = vpop.permute.xlu0 %70
    %74 = vset.pattern.permute.xlu0 0
    %75 = vperm.xlu0 %74, %v37
    %v76 = vpop.permute.xlu0 %75
    %v78 = vld [vmem:[%s4] sm:$0x3]
    %80 = vset.pattern.permute.xlu0 0
    %81 = vperm.xlu0 %80, %v78
    %v82 = vpop.permute.xlu0 %81
    %v84 = vld [vmem:[%s0] sm:$0xf]
    %vm85 = vcmask 31744
    %v87 = vsel %vm85, %v21, 0
    %v90 = vsel %vm85, %v22, 0
    %v93 = vsel %vm85, %v23, 0
    %v96 = vsel %vm85, %v24, 0
    %v99 = vsel %vm85, %v25, 0
    %v102 = vsel %vm85, %v26, 0
    %v105 = vsel %vm85, %v27, 0
    %v108 = vsel %vm85, %v28, 0
    %vm110 = vcmask 1043456
    %v112 = vsel %vm110, %v84, 0
    %114 = vmatprep.subr.mxu0 0.0
    %115 = vmatpush1.msra.mxu0 0.0
    %116 = vmatprep.subr.mxu0 0.0
    %117 = vmatpush1.msra.mxu0 0.0
    %118 = vmatprep.subr.mxu0 0.0
    %119 = vmatpush1.msra.mxu0 0.0
    %120 = vmatprep.subr.mxu0 0.0
    %121 = vmatpush1.msra.mxu0 0.0
    %122 = vmatprep.subr.mxu0 0.0
    %123 = vmatpush1.msra.mxu0 0.0
    %124 = vmatprep.subr.mxu0 0.0
    %125 = vmatpush1.msra.mxu0 0.0
    %126 = vmatprep.subr.mxu0 0.0
    %127 = vmatpush1.msra.mxu0 0.0
    %128 = vmatprep.subr.mxu0 0.0
    %129 = vmatpush1.msra.mxu0 0.0
    %130 = vmatprep.subr.mxu0 0.0
    %131 = vmatpush1.msra.mxu0 0.0
    %132 = vmatprep.subr.mxu0 0.0
    %133 = vmatpush1.msra.mxu0 0.0
    %134 = vmatprep.subr.mxu0 0.0
    %135 = vmatpush1.msra.mxu0 0.0
    %136 = vmatprep.subr.mxu0 0.0
    %137 = vmatpush1.msra.mxu0 0.0
    %138 = vmatprep.subr.mxu0 0.0
    %139 = vmatpush1.msra.mxu0 0.0
    %140 = vmatprep.subr.mxu0 0.0
    %141 = vmatpush1.msra.mxu0 0.0
    %142 = vmatprep.subr.mxu0 0.0
    %143 = vmatpush1.msra.mxu0 0.0
    %144 = vmatprep.subr.mxu0 0.0
    %145 = vmatpush1.msra.mxu0 %v112
    %146 = vmatprep.subr.mxu0 0.0
    %147 = vmatpush2.msra.mxu0 0.0
    %148 = vmatprep.subr.mxu0 0.0
    %149 = vmatpush2.msra.mxu0 0.0
    %150 = vmatprep.subr.mxu0 0.0
    %151 = vmatpush2.msra.mxu0 0.0
    %152 = vmatprep.subr.mxu0 0.0
    %153 = vmatpush2.msra.mxu0 0.0
    %154 = vmatprep.subr.mxu0 0.0
    %155 = vmatpush2.msra.mxu0 0.0
    %156 = vmatprep.subr.mxu0 0.0
    %157 = vmatpush2.msra.mxu0 0.0
    %158 = vmatprep.subr.mxu0 0.0
    %159 = vmatpush2.msra.mxu0 0.0
    %160 = vmatprep.subr.mxu0 0.0
    %161 = vmatpush2.msra.mxu0 0.0
    %162 = vmatprep.subr.mxu0 0.0
    %163 = vmatpush2.msra.mxu0 0.0
    %164 = vmatprep.subr.mxu0 0.0
    %165 = vmatpush2.msra.mxu0 0.0
    %166 = vmatprep.subr.mxu0 0.0
    %167 = vmatpush2.msra.mxu0 0.0
    %168 = vmatprep.subr.mxu0 0.0
    %169 = vmatpush2.msra.mxu0 0.0
    %170 = vmatprep.subr.mxu0 0.0
    %171 = vmatpush2.msra.mxu0 0.0
    %172 = vmatprep.subr.mxu0 0.0
    %173 = vmatpush2.msra.mxu0 0.0
    %174 = vmatprep.subr.mxu0 0.0
    %175 = vmatpush2.msra.mxu0 0.0
    %176 = vmatprep.subr.mxu0 0.0
    %177 = vmatpush2.msra.mxu0 0.0
    %178 = vmatprep.mubr.f32.mxu0 0.0
    %179 = vmatmul.mubr.f32.gmra.mxu0 %v87
    %v180 = vpop.f32.mrf.mxu0
    %v181 = vadd.f32 %v41, %v180
    %v182 = vpop.f32.mrf.mxu0
    %183 = vmatprep.mubr.f32.mxu0 0.0
    %184 = vmatmul.mubr.f32.gmra.mxu0 %v90
    %v185 = vpop.f32.mrf.mxu0
    %v186 = vadd.f32 %v46, %v185
    %v187 = vpop.f32.mrf.mxu0
    %188 = vmatprep.mubr.f32.mxu0 0.0
    %189 = vmatmul.mubr.f32.gmra.mxu0 %v93
    %v190 = vpop.f32.mrf.mxu0
    %v191 = vadd.f32 %v51, %v190
    %v192 = vpop.f32.mrf.mxu0
    %193 = vmatprep.mubr.f32.mxu0 0.0
    %194 = vmatmul.mubr.f32.gmra.mxu0 %v96
    %v195 = vpop.f32.mrf.mxu0
    %v196 = vadd.f32 %v56, %v195
    %v197 = vpop.f32.mrf.mxu0
    %198 = vmatprep.mubr.f32.mxu0 0.0
    %199 = vmatmul.mubr.f32.gmra.mxu0 %v99
    %v200 = vpop.f32.mrf.mxu0
    %v201 = vadd.f32 %v61, %v200
    %v202 = vpop.f32.mrf.mxu0
    %203 = vmatprep.mubr.f32.mxu0 0.0
    %204 = vmatmul.mubr.f32.gmra.mxu0 %v102
    %v205 = vpop.f32.mrf.mxu0
    %v206 = vadd.f32 %v66, %v205
    %v207 = vpop.f32.mrf.mxu0
    %208 = vmatprep.mubr.f32.mxu0 0.0
    %209 = vmatmul.mubr.f32.gmra.mxu0 %v105
    %v210 = vpop.f32.mrf.mxu0
    %v211 = vadd.f32 %v71, %v210
    %v212 = vpop.f32.mrf.mxu0
    %213 = vmatprep.mubr.f32.mxu0 0.0
    %214 = vmatmul.mubr.f32.gmra.mxu0 %v108
    %v215 = vpop.f32.mrf.mxu0
    %v216 = vadd.f32 %v76, %v215
    %v217 = vpop.f32.mrf.mxu0
    %218 = vdwg.mxu0
    %v219 = vtanh.pop %v181
    %v220 = vtanh.pop %v186
    %v221 = vtanh.pop %v191
    %v222 = vtanh.pop %v196
    %v223 = vtanh.pop %v201
    %v224 = vtanh.pop %v206
    %v225 = vtanh.pop %v211
    %v226 = vtanh.pop %v216
    %vm227 = vcmask 523264
    %v229 = vsel %vm227, %v29, 0
    %231 = vmatprep.subr.mxu0 0.0
    %232 = vmatpush1.msra.mxu0 0.0
    %233 = vmatprep.subr.mxu0 0.0
    %234 = vmatpush1.msra.mxu0 0.0
    %235 = vmatprep.subr.mxu0 0.0
    %236 = vmatpush1.msra.mxu0 0.0
    %237 = vmatprep.subr.mxu0 0.0
    %238 = vmatpush1.msra.mxu0 0.0
    %239 = vmatprep.subr.mxu0 0.0
    %240 = vmatpush1.msra.mxu0 0.0
    %241 = vmatprep.subr.mxu0 0.0
    %242 = vmatpush1.msra.mxu0 0.0
    %243 = vmatprep.subr.mxu0 0.0
    %244 = vmatpush1.msra.mxu0 0.0
    %245 = vmatprep.subr.mxu0 0.0
    %246 = vmatpush1.msra.mxu0 0.0
    %247 = vmatprep.subr.mxu0 0.0
    %248 = vmatpush1.msra.mxu0 %v226
    %249 = vmatprep.subr.mxu0 0.0
    %250 = vmatpush1.msra.mxu0 %v225
    %251 = vmatprep.subr.mxu0 0.0
    %252 = vmatpush1.msra.mxu0 %v224
    %253 = vmatprep.subr.mxu0 0.0
    %254 = vmatpush1.msra.mxu0 %v223
    %255 = vmatprep.subr.mxu0 0.0
    %256 = vmatpush1.msra.mxu0 %v222
    %257 = vmatprep.subr.mxu0 0.0
    %258 = vmatpush1.msra.mxu0 %v221
    %259 = vmatprep.subr.mxu0 0.0
    %260 = vmatpush1.msra.mxu0 %v220
    %261 = vmatprep.subr.mxu0 0.0
    %262 = vmatpush1.msra.mxu0 %v219
    %263 = vmatprep.subr.mxu0 0.0
    %264 = vmatpush2.msra.mxu0 0.0
    %265 = vmatprep.subr.mxu0 0.0
    %266 = vmatpush2.msra.mxu0 0.0
    %267 = vmatprep.subr.mxu0 0.0
    %268 = vmatpush2.msra.mxu0 0.0
    %269 = vmatprep.subr.mxu0 0.0
    %270 = vmatpush2.msra.mxu0 0.0
    %271 = vmatprep.subr.mxu0 0.0
    %272 = vmatpush2.msra.mxu0 0.0
    %273 = vmatprep.subr.mxu0 0.0
    %274 = vmatpush2.msra.mxu0 0.0
    %275 = vmatprep.subr.mxu0 0.0
    %276 = vmatpush2.msra.mxu0 0.0
    %277 = vmatprep.subr.mxu0 0.0
    %278 = vmatpush2.msra.mxu0 0.0
    %279 = vmatprep.subr.mxu0 0.0
    %280 = vmatpush2.msra.mxu0 0.0
    %281 = vmatprep.subr.mxu0 0.0
    %282 = vmatpush2.msra.mxu0 0.0
    %283 = vmatprep.subr.mxu0 0.0
    %284 = vmatpush2.msra.mxu0 0.0
    %285 = vmatprep.subr.mxu0 0.0
    %286 = vmatpush2.msra.mxu0 0.0
    %287 = vmatprep.subr.mxu0 0.0
    %288 = vmatpush2.msra.mxu0 0.0
    %289 = vmatprep.subr.mxu0 0.0
    %290 = vmatpush2.msra.mxu0 0.0
    %291 = vmatprep.subr.mxu0 0.0
    %292 = vmatpush2.msra.mxu0 0.0
    %293 = vmatprep.subr.mxu0 0.0
    %294 = vmatpush2.msra.mxu0 0.0
    %295 = vmatprep.mubr.f32.mxu0 0.0
    %296 = vmatmul.mubr.f32.gmra.mxu0 %v229
    %v297 = vpop.f32.mrf.mxu0
    %v298 = vadd.f32 %v82, %v297
    %v299 = vpop.f32.mrf.mxu0
    %300 = vdwg.mxu0
    %301 = vst [vmem:[#allocation2] sm:$0x3] %v298
    // Predicated region
    $region22: #{mlp_forward.1} parent=1 // pred_check
      _
    $region23: #{mlp_forward.1} parent=1 // pred_check_branch
      %303 = sbr.rel (0) target = $region25
    $region24: #{mlp_forward.1} parent=1 // pred_region
      %s305 = ssub.s32 32, 32
      %306 = vsyncadd [#allocation3], %s305
      %s308 = sshll.u32 [#allocation2], 4
      %s309 = int_to_ptr.vmem [resolvable:$true] %s308
      %311 = dma.vmem_to_hbm [thread:$0]  %s309, 32, %s5, [#allocation3]
    $region25: #{mlp_forward.1} parent=1 // pred_fallthru
      _
    // Predicated region
    $region26: #{mlp_forward.1} parent=1 // pred_check
      _
    $region27: #{mlp_forward.1} parent=1 // pred_check_branch
      %313 = sbr.rel (0) target = $region29
    $region28: #{mlp_forward.1} parent=1 // pred_region
      %314 = dma.done [#allocation3], 32
    $region29: #{mlp_forward.1} parent=1 // pred_fallthru
      _
    %315 = vsyncpa [#allocation3], 1

</llo_original>
